<compile_context>
chip_gen: v7x
topology: tpu7x:2x2x1
jax: 0.10.0
libtpu: 0.0.40
codegen_flags: <defaults>
</compile_context>

<pallas_src>
import numpy as np
import jax
import jax.numpy as jnp
from jax.experimental import pallas as pl
from jax.experimental.pallas import tpu as pltpu


def embedding_kernel(ids_ref, pos_ref, tok_hbm, out_ref, rows_vmem, row_sems):
    # ids_ref : (B*S,)       int32   token ids, scalar-prefetched into SMEM
    # pos_ref : (S, D)       float32 positional rows for arange(S) (VMEM block)
    # tok_hbm : (V, D)       float32 token embedding table, HBM-resident (pl.ANY)
    # out_ref : (TILE_ROWS, D) float32 output block for this row tile
    # rows_vmem: (TILE_ROWS, D) VMEM scratch receiving the gathered rows
    # row_sems : (TILE_ROWS,) DMA semaphores, one per in-flight row copy
    tile = pl.program_id(0)
    tile_rows, _ = out_ref.shape
    seq_len = pos_ref.shape[0]
    vocab = tok_hbm.shape[0]
    tile_b = tile_rows // seq_len          # whole sequences per tile
    base = tile * tile_rows                # first flattened row of this tile

    # Issue all row-gather DMAs for this tile up front (all in flight at once),
    # then wait. Each DMA moves exactly one used embedding row HBM -> VMEM.
    copies = []
    for r in range(tile_rows):             # static trip count -> unrolled
        row_id = ids_ref[base + r]
        # Clamp like JAX fancy indexing (also avoids an out-of-bounds DMA).
        row_id = jnp.clip(row_id, 0, vocab - 1)
        cp = pltpu.make_async_copy(
            tok_hbm.at[pl.ds(row_id, 1), :],
            rows_vmem.at[pl.ds(r, 1), :],
            row_sems.at[r])
        cp.start()
        copies.append(cp)
    for cp in copies:
        cp.wait()

    # Add positional embeddings; the tile holds `tile_b` whole sequences, so
    # positions within the tile are arange(S) repeated tile_b times.
    pos = pos_ref[...]
    if tile_b > 1:
        pos = jnp.tile(pos, (tile_b, 1))
    out_ref[...] = rows_vmem[...] + pos
    # Dropout = identity (inference semantics).


def embedding_layer(token_ids, tok_table, pos_table, *, target_rows_per_tile=256):
    B, S = token_ids.shape
    V, D = tok_table.shape

    # Wrapper-side layout plumbing only.
    ids_flat = token_ids.reshape(B * S).astype(jnp.int32)
    pos_slice = pos_table[:S]

    # Row tiles cover whole sequences (tile = tile_b * S rows). Aim for
    # ~target_rows_per_tile rows per step, but keep >= 2 grid steps when B >= 2
    # so the "parallel" grid axis can use both v7x TensorCores.
    max_tile_b = max(1, target_rows_per_tile // max(S, 1))
    if B >= 2:
        max_tile_b = min(max_tile_b, max(1, B // 2))
    tile_b = 1
    for cand in range(min(max_tile_b, B), 0, -1):
        if B % cand == 0:
            tile_b = cand
            break
    num_tiles = B // tile_b
    tile_rows = tile_b * S

    out_flat = pl.pallas_call(
        embedding_kernel,
        out_shape=jax.ShapeDtypeStruct((B * S, D), jnp.float32),
        grid_spec=pltpu.PrefetchScalarGridSpec(
            num_scalar_prefetch=1,           # ids -> SMEM, visible to index_maps
            grid=(num_tiles,),
            in_specs=[
                # Positional rows: small constant block, re-used every tile.
                pl.BlockSpec((S, D), lambda t, ids: (0, 0)),
                # Token table: never copied into VMEM; gathered row-by-row.
                pl.BlockSpec(memory_space=pl.ANY),
            ],
            out_specs=pl.BlockSpec((tile_rows, D), lambda t, ids: (t, 0)),
            scratch_shapes=[
                pltpu.VMEM((tile_rows, D), tok_table.dtype),
                pltpu.SemaphoreType.DMA((tile_rows,)),
            ],
        ),
        compiler_params=pltpu.CompilerParams(
            dimension_semantics=("parallel",)),
    )(ids_flat, pos_slice, tok_table)

    return out_flat.reshape(B, S, D)


if __name__ == "__main__":
    B, S = 2, 8
    vocab_size, d_model, max_seq_len = 128, 128, 16   # D=128 -> lane-dense output

    key = jax.random.PRNGKey(0)
    k_ids, k_tok, k_pos = jax.random.split(key, 3)
    token_ids = jax.random.randint(k_ids, (B, S), 0, vocab_size, dtype=jnp.int32)
    tok_table = jax.random.normal(k_tok, (vocab_size, d_model), jnp.float32) * 0.02
    pos_table = jax.random.normal(k_pos, (max_seq_len, d_model), jnp.float32) * 0.02

    out = jax.block_until_ready(embedding_layer(token_ids, tok_table, pos_table))

    # Pure-JAX mirror of the PyTorch forward (inference; dropout = identity).
    ref = tok_table[token_ids] + pos_table[:S][None, :, :]
    ref = jax.block_until_ready(ref)

    if not np.allclose(np.asarray(out), np.asarray(ref), rtol=1e-6, atol=1e-6):
        raise AssertionError("Pallas kernel output does not match JAX reference")

    print("KERNEL_OK")
</pallas_src>

<mosaic_0001>
module attributes {stable_mosaic.version = 11 : i64} {
  func.func @embedding_kernel(%arg0: i32, %arg1: memref<16xi32, #tpu.memory_space<smem>>, %arg2: memref<8x128xf32, #tpu.memory_space<vmem>>, %arg3: memref<128x128xf32, #tpu.memory_space<any>>, %arg4: memref<8x128xf32, #tpu.memory_space<vmem>>, %arg5: memref<8x128xf32, #tpu.memory_space<vmem>>, %arg6: memref<8x!tpu.dma_semaphore, #tpu.memory_space<semaphore_mem>>) attributes {dimension_semantics = [#tpu.dimension_semantics<parallel>], iteration_bounds = array<i64: 2>, scalar_prefetch = 1 : i64, scratch_operands = 2 : i64, tpu.core_type = #tpu.core_type<tc>, window_params = [{pipeline_mode = #tpu.pipeline_mode<synchronous>, transform_indices = @transform_0, window_bounds = array<i64: 8, 128>}, {}, {transform_indices = @transform_2, window_bounds = array<i64: 8, 128>}]} {
    %c8_i32 = arith.constant 8 : i32
    %0 = arith.muli %arg0, %c8_i32 : i32
    %c0_i32 = arith.constant 0 : i32
    %1 = arith.addi %0, %c0_i32 : i32
    %2 = arith.index_cast %1 : i32 to index
    %3 = memref.load %arg1[%2] : memref<16xi32, #tpu.memory_space<smem>>
    %c0_i32_0 = arith.constant 0 : i32
    %c127_i32 = arith.constant 127 : i32
    %4 = arith.maxsi %c0_i32_0, %3 : i32
    %5 = arith.minsi %c127_i32, %4 : i32
    %c0_i32_1 = arith.constant 0 : i32
    %c0_i32_2 = arith.constant 0 : i32
    %6 = tpu.memref_slice %arg3[%5, %c0_i32_2] : memref<128x128xf32, #tpu.memory_space<any>> -> memref<1x128xf32, #tpu.memory_space<any>>
    %c0_i32_3 = arith.constant 0 : i32
    %c0_i32_4 = arith.constant 0 : i32
    %7 = tpu.memref_slice %arg5[%c0_i32_3, %c0_i32_4] : memref<8x128xf32, #tpu.memory_space<vmem>> -> memref<1x128xf32, #tpu.memory_space<vmem>>
    %8 = tpu.memref_slice %arg6[%c0_i32_1] : memref<8x!tpu.dma_semaphore, #tpu.memory_space<semaphore_mem>> -> memref<1x!tpu.dma_semaphore, #tpu.memory_space<semaphore_mem>>
    %9 = tpu.memref_squeeze %8 : memref<1x!tpu.dma_semaphore, #tpu.memory_space<semaphore_mem>> -> memref<!tpu.dma_semaphore, #tpu.memory_space<semaphore_mem>>
    tpu.enqueue_dma source(%6 : memref<1x128xf32, #tpu.memory_space<any>>) target(%7 : memref<1x128xf32, #tpu.memory_space<vmem>>) target_semaphore(%9 : memref<!tpu.dma_semaphore, #tpu.memory_space<semaphore_mem>>)
    %c1_i32 = arith.constant 1 : i32
    %10 = arith.addi %0, %c1_i32 : i32
    %11 = arith.index_cast %10 : i32 to index
    %12 = memref.load %arg1[%11] : memref<16xi32, #tpu.memory_space<smem>>
    %c0_i32_5 = arith.constant 0 : i32
    %c127_i32_6 = arith.constant 127 : i32
    %13 = arith.maxsi %c0_i32_5, %12 : i32
    %14 = arith.minsi %c127_i32_6, %13 : i32
    %c1_i32_7 = arith.constant 1 : i32
    %c0_i32_8 = arith.constant 0 : i32
    %15 = tpu.memref_slice %arg3[%14, %c0_i32_8] : memref<128x128xf32, #tpu.memory_space<any>> -> memref<1x128xf32, #tpu.memory_space<any>>
    %c1_i32_9 = arith.constant 1 : i32
    %c0_i32_10 = arith.constant 0 : i32
    %16 = tpu.memref_slice %arg5[%c1_i32_9, %c0_i32_10] : memref<8x128xf32, #tpu.memory_space<vmem>> -> memref<1x128xf32, #tpu.memory_space<vmem>>
    %17 = tpu.memref_slice %arg6[%c1_i32_7] : memref<8x!tpu.dma_semaphore, #tpu.memory_space<semaphore_mem>> -> memref<1x!tpu.dma_semaphore, #tpu.memory_space<semaphore_mem>>
    %18 = tpu.memref_squeeze %17 : memref<1x!tpu.dma_semaphore, #tpu.memory_space<semaphore_mem>> -> memref<!tpu.dma_semaphore, #tpu.memory_space<semaphore_mem>>
    tpu.enqueue_dma source(%15 : memref<1x128xf32, #tpu.memory_space<any>>) target(%16 : memref<1x128xf32, #tpu.memory_space<vmem>>) target_semaphore(%18 : memref<!tpu.dma_semaphore, #tpu.memory_space<semaphore_mem>>)
    %c2_i32 = arith.constant 2 : i32
    %19 = arith.addi %0, %c2_i32 : i32
    %20 = arith.index_cast %19 : i32 to index
    %21 = memref.load %arg1[%20] : memref<16xi32, #tpu.memory_space<smem>>
    %c0_i32_11 = arith.constant 0 : i32
    %c127_i32_12 = arith.constant 127 : i32
    %22 = arith.maxsi %c0_i32_11, %21 : i32
    %23 = arith.minsi %c127_i32_12, %22 : i32
    %c2_i32_13 = arith.constant 2 : i32
    %c0_i32_14 = arith.constant 0 : i32
    %24 = tpu.memref_slice %arg3[%23, %c0_i32_14] : memref<128x128xf32, #tpu.memory_space<any>> -> memref<1x128xf32, #tpu.memory_space<any>>
    %c2_i32_15 = arith.constant 2 : i32
    %c0_i32_16 = arith.constant 0 : i32
    %25 = tpu.memref_slice %arg5[%c2_i32_15, %c0_i32_16] : memref<8x128xf32, #tpu.memory_space<vmem>> -> memref<1x128xf32, #tpu.memory_space<vmem>>
    %26 = tpu.memref_slice %arg6[%c2_i32_13] : memref<8x!tpu.dma_semaphore, #tpu.memory_space<semaphore_mem>> -> memref<1x!tpu.dma_semaphore, #tpu.memory_space<semaphore_mem>>
    %27 = tpu.memref_squeeze %26 : memref<1x!tpu.dma_semaphore, #tpu.memory_space<semaphore_mem>> -> memref<!tpu.dma_semaphore, #tpu.memory_space<semaphore_mem>>
    tpu.enqueue_dma source(%24 : memref<1x128xf32, #tpu.memory_space<any>>) target(%25 : memref<1x128xf32, #tpu.memory_space<vmem>>) target_semaphore(%27 : memref<!tpu.dma_semaphore, #tpu.memory_space<semaphore_mem>>)
    %c3_i32 = arith.constant 3 : i32
    %28 = arith.addi %0, %c3_i32 : i32
    %29 = arith.index_cast %28 : i32 to index
    %30 = memref.load %arg1[%29] : memref<16xi32, #tpu.memory_space<smem>>
    %c0_i32_17 = arith.constant 0 : i32
    %c127_i32_18 = arith.constant 127 : i32
    %31 = arith.maxsi %c0_i32_17, %30 : i32
    %32 = arith.minsi %c127_i32_18, %31 : i32
    %c3_i32_19 = arith.constant 3 : i32
    %c0_i32_20 = arith.constant 0 : i32
    %33 = tpu.memref_slice %arg3[%32, %c0_i32_20] : memref<128x128xf32, #tpu.memory_space<any>> -> memref<1x128xf32, #tpu.memory_space<any>>
    %c3_i32_21 = arith.constant 3 : i32
    %c0_i32_22 = arith.constant 0 : i32
    %34 = tpu.memref_slice %arg5[%c3_i32_21, %c0_i32_22] : memref<8x128xf32, #tpu.memory_space<vmem>> -> memref<1x128xf32, #tpu.memory_space<vmem>>
    %35 = tpu.memref_slice %arg6[%c3_i32_19] : memref<8x!tpu.dma_semaphore, #tpu.memory_space<semaphore_mem>> -> memref<1x!tpu.dma_semaphore, #tpu.memory_space<semaphore_mem>>
    %36 = tpu.memref_squeeze %35 : memref<1x!tpu.dma_semaphore, #tpu.memory_space<semaphore_mem>> -> memref<!tpu.dma_semaphore, #tpu.memory_space<semaphore_mem>>
    tpu.enqueue_dma source(%33 : memref<1x128xf32, #tpu.memory_space<any>>) target(%34 : memref<1x128xf32, #tpu.memory_space<vmem>>) target_semaphore(%36 : memref<!tpu.dma_semaphore, #tpu.memory_space<semaphore_mem>>)
    %c4_i32 = arith.constant 4 : i32
    %37 = arith.addi %0, %c4_i32 : i32
    %38 = arith.index_cast %37 : i32 to index
    %39 = memref.load %arg1[%38] : memref<16xi32, #tpu.memory_space<smem>>
    %c0_i32_23 = arith.constant 0 : i32
    %c127_i32_24 = arith.constant 127 : i32
    %40 = arith.maxsi %c0_i32_23, %39 : i32
    %41 = arith.minsi %c127_i32_24, %40 : i32
    %c4_i32_25 = arith.constant 4 : i32
    %c0_i32_26 = arith.constant 0 : i32
    %42 = tpu.memref_slice %arg3[%41, %c0_i32_26] : memref<128x128xf32, #tpu.memory_space<any>> -> memref<1x128xf32, #tpu.memory_space<any>>
    %c4_i32_27 = arith.constant 4 : i32
    %c0_i32_28 = arith.constant 0 : i32
    %43 = tpu.memref_slice %arg5[%c4_i32_27, %c0_i32_28] : memref<8x128xf32, #tpu.memory_space<vmem>> -> memref<1x128xf32, #tpu.memory_space<vmem>>
    %44 = tpu.memref_slice %arg6[%c4_i32_25] : memref<8x!tpu.dma_semaphore, #tpu.memory_space<semaphore_mem>> -> memref<1x!tpu.dma_semaphore, #tpu.memory_space<semaphore_mem>>
    %45 = tpu.memref_squeeze %44 : memref<1x!tpu.dma_semaphore, #tpu.memory_space<semaphore_mem>> -> memref<!tpu.dma_semaphore, #tpu.memory_space<semaphore_mem>>
    tpu.enqueue_dma source(%42 : memref<1x128xf32, #tpu.memory_space<any>>) target(%43 : memref<1x128xf32, #tpu.memory_space<vmem>>) target_semaphore(%45 : memref<!tpu.dma_semaphore, #tpu.memory_space<semaphore_mem>>)
    %c5_i32 = arith.constant 5 : i32
    %46 = arith.addi %0, %c5_i32 : i32
    %47 = arith.index_cast %46 : i32 to index
    %48 = memref.load %arg1[%47] : memref<16xi32, #tpu.memory_space<smem>>
    %c0_i32_29 = arith.constant 0 : i32
    %c127_i32_30 = arith.constant 127 : i32
    %49 = arith.maxsi %c0_i32_29, %48 : i32
    %50 = arith.minsi %c127_i32_30, %49 : i32
    %c5_i32_31 = arith.constant 5 : i32
    %c0_i32_32 = arith.constant 0 : i32
    %51 = tpu.memref_slice %arg3[%50, %c0_i32_32] : memref<128x128xf32, #tpu.memory_space<any>> -> memref<1x128xf32, #tpu.memory_space<any>>
    %c5_i32_33 = arith.constant 5 : i32
    %c0_i32_34 = arith.constant 0 : i32
    %52 = tpu.memref_slice %arg5[%c5_i32_33, %c0_i32_34] : memref<8x128xf32, #tpu.memory_space<vmem>> -> memref<1x128xf32, #tpu.memory_space<vmem>>
    %53 = tpu.memref_slice %arg6[%c5_i32_31] : memref<8x!tpu.dma_semaphore, #tpu.memory_space<semaphore_mem>> -> memref<1x!tpu.dma_semaphore, #tpu.memory_space<semaphore_mem>>
    %54 = tpu.memref_squeeze %53 : memref<1x!tpu.dma_semaphore, #tpu.memory_space<semaphore_mem>> -> memref<!tpu.dma_semaphore, #tpu.memory_space<semaphore_mem>>
    tpu.enqueue_dma source(%51 : memref<1x128xf32, #tpu.memory_space<any>>) target(%52 : memref<1x128xf32, #tpu.memory_space<vmem>>) target_semaphore(%54 : memref<!tpu.dma_semaphore, #tpu.memory_space<semaphore_mem>>)
    %c6_i32 = arith.constant 6 : i32
    %55 = arith.addi %0, %c6_i32 : i32
    %56 = arith.index_cast %55 : i32 to index
    %57 = memref.load %arg1[%56] : memref<16xi32, #tpu.memory_space<smem>>
    %c0_i32_35 = arith.constant 0 : i32
    %c127_i32_36 = arith.constant 127 : i32
    %58 = arith.maxsi %c0_i32_35, %57 : i32
    %59 = arith.minsi %c127_i32_36, %58 : i32
    %c6_i32_37 = arith.constant 6 : i32
    %c0_i32_38 = arith.constant 0 : i32
    %60 = tpu.memref_slice %arg3[%59, %c0_i32_38] : memref<128x128xf32, #tpu.memory_space<any>> -> memref<1x128xf32, #tpu.memory_space<any>>
    %c6_i32_39 = arith.constant 6 : i32
    %c0_i32_40 = arith.constant 0 : i32
    %61 = tpu.memref_slice %arg5[%c6_i32_39, %c0_i32_40] : memref<8x128xf32, #tpu.memory_space<vmem>> -> memref<1x128xf32, #tpu.memory_space<vmem>>
    %62 = tpu.memref_slice %arg6[%c6_i32_37] : memref<8x!tpu.dma_semaphore, #tpu.memory_space<semaphore_mem>> -> memref<1x!tpu.dma_semaphore, #tpu.memory_space<semaphore_mem>>
    %63 = tpu.memref_squeeze %62 : memref<1x!tpu.dma_semaphore, #tpu.memory_space<semaphore_mem>> -> memref<!tpu.dma_semaphore, #tpu.memory_space<semaphore_mem>>
    tpu.enqueue_dma source(%60 : memref<1x128xf32, #tpu.memory_space<any>>) target(%61 : memref<1x128xf32, #tpu.memory_space<vmem>>) target_semaphore(%63 : memref<!tpu.dma_semaphore, #tpu.memory_space<semaphore_mem>>)
    %c7_i32 = arith.constant 7 : i32
    %64 = arith.addi %0, %c7_i32 : i32
    %65 = arith.index_cast %64 : i32 to index
    %66 = memref.load %arg1[%65] : memref<16xi32, #tpu.memory_space<smem>>
    %c0_i32_41 = arith.constant 0 : i32
    %c127_i32_42 = arith.constant 127 : i32
    %67 = arith.maxsi %c0_i32_41, %66 : i32
    %68 = arith.minsi %c127_i32_42, %67 : i32
    %c7_i32_43 = arith.constant 7 : i32
    %c0_i32_44 = arith.constant 0 : i32
    %69 = tpu.memref_slice %arg3[%68, %c0_i32_44] : memref<128x128xf32, #tpu.memory_space<any>> -> memref<1x128xf32, #tpu.memory_space<any>>
    %c7_i32_45 = arith.constant 7 : i32
    %c0_i32_46 = arith.constant 0 : i32
    %70 = tpu.memref_slice %arg5[%c7_i32_45, %c0_i32_46] : memref<8x128xf32, #tpu.memory_space<vmem>> -> memref<1x128xf32, #tpu.memory_space<vmem>>
    %71 = tpu.memref_slice %arg6[%c7_i32_43] : memref<8x!tpu.dma_semaphore, #tpu.memory_space<semaphore_mem>> -> memref<1x!tpu.dma_semaphore, #tpu.memory_space<semaphore_mem>>
    %72 = tpu.memref_squeeze %71 : memref<1x!tpu.dma_semaphore, #tpu.memory_space<semaphore_mem>> -> memref<!tpu.dma_semaphore, #tpu.memory_space<semaphore_mem>>
    tpu.enqueue_dma source(%69 : memref<1x128xf32, #tpu.memory_space<any>>) target(%70 : memref<1x128xf32, #tpu.memory_space<vmem>>) target_semaphore(%72 : memref<!tpu.dma_semaphore, #tpu.memory_space<semaphore_mem>>)
    %c0_i32_47 = arith.constant 0 : i32
    %c0_i32_48 = arith.constant 0 : i32
    %73 = tpu.memref_slice %arg3[%5, %c0_i32_48] : memref<128x128xf32, #tpu.memory_space<any>> -> memref<1x128xf32, #tpu.memory_space<any>>
    %c0_i32_49 = arith.constant 0 : i32
    %c0_i32_50 = arith.constant 0 : i32
    %74 = tpu.memref_slice %arg5[%c0_i32_49, %c0_i32_50] : memref<8x128xf32, #tpu.memory_space<vmem>> -> memref<1x128xf32, #tpu.memory_space<vmem>>
    %75 = tpu.memref_slice %arg6[%c0_i32_47] : memref<8x!tpu.dma_semaphore, #tpu.memory_space<semaphore_mem>> -> memref<1x!tpu.dma_semaphore, #tpu.memory_space<semaphore_mem>>
    %76 = tpu.memref_squeeze %75 : memref<1x!tpu.dma_semaphore, #tpu.memory_space<semaphore_mem>> -> memref<!tpu.dma_semaphore, #tpu.memory_space<semaphore_mem>>
    tpu.wait_dma2 semaphore(%76 : memref<!tpu.dma_semaphore, #tpu.memory_space<semaphore_mem>>) src(%73 : memref<1x128xf32, #tpu.memory_space<any>>) dst(%74 : memref<1x128xf32, #tpu.memory_space<vmem>>)
    %c1_i32_51 = arith.constant 1 : i32
    %c0_i32_52 = arith.constant 0 : i32
    %77 = tpu.memref_slice %arg3[%14, %c0_i32_52] : memref<128x128xf32, #tpu.memory_space<any>> -> memref<1x128xf32, #tpu.memory_space<any>>
    %c1_i32_53 = arith.constant 1 : i32
    %c0_i32_54 = arith.constant 0 : i32
    %78 = tpu.memref_slice %arg5[%c1_i32_53, %c0_i32_54] : memref<8x128xf32, #tpu.memory_space<vmem>> -> memref<1x128xf32, #tpu.memory_space<vmem>>
    %79 = tpu.memref_slice %arg6[%c1_i32_51] : memref<8x!tpu.dma_semaphore, #tpu.memory_space<semaphore_mem>> -> memref<1x!tpu.dma_semaphore, #tpu.memory_space<semaphore_mem>>
    %80 = tpu.memref_squeeze %79 : memref<1x!tpu.dma_semaphore, #tpu.memory_space<semaphore_mem>> -> memref<!tpu.dma_semaphore, #tpu.memory_space<semaphore_mem>>
    tpu.wait_dma2 semaphore(%80 : memref<!tpu.dma_semaphore, #tpu.memory_space<semaphore_mem>>) src(%77 : memref<1x128xf32, #tpu.memory_space<any>>) dst(%78 : memref<1x128xf32, #tpu.memory_space<vmem>>)
    %c2_i32_55 = arith.constant 2 : i32
    %c0_i32_56 = arith.constant 0 : i32
    %81 = tpu.memref_slice %arg3[%23, %c0_i32_56] : memref<128x128xf32, #tpu.memory_space<any>> -> memref<1x128xf32, #tpu.memory_space<any>>
    %c2_i32_57 = arith.constant 2 : i32
    %c0_i32_58 = arith.constant 0 : i32
    %82 = tpu.memref_slice %arg5[%c2_i32_57, %c0_i32_58] : memref<8x128xf32, #tpu.memory_space<vmem>> -> memref<1x128xf32, #tpu.memory_space<vmem>>
    %83 = tpu.memref_slice %arg6[%c2_i32_55] : memref<8x!tpu.dma_semaphore, #tpu.memory_space<semaphore_mem>> -> memref<1x!tpu.dma_semaphore, #tpu.memory_space<semaphore_mem>>
    %84 = tpu.memref_squeeze %83 : memref<1x!tpu.dma_semaphore, #tpu.memory_space<semaphore_mem>> -> memref<!tpu.dma_semaphore, #tpu.memory_space<semaphore_mem>>
    tpu.wait_dma2 semaphore(%84 : memref<!tpu.dma_semaphore, #tpu.memory_space<semaphore_mem>>) src(%81 : memref<1x128xf32, #tpu.memory_space<any>>) dst(%82 : memref<1x128xf32, #tpu.memory_space<vmem>>)
    %c3_i32_59 = arith.constant 3 : i32
    %c0_i32_60 = arith.constant 0 : i32
    %85 = tpu.memref_slice %arg3[%32, %c0_i32_60] : memref<128x128xf32, #tpu.memory_space<any>> -> memref<1x128xf32, #tpu.memory_space<any>>
    %c3_i32_61 = arith.constant 3 : i32
    %c0_i32_62 = arith.constant 0 : i32
    %86 = tpu.memref_slice %arg5[%c3_i32_61, %c0_i32_62] : memref<8x128xf32, #tpu.memory_space<vmem>> -> memref<1x128xf32, #tpu.memory_space<vmem>>
    %87 = tpu.memref_slice %arg6[%c3_i32_59] : memref<8x!tpu.dma_semaphore, #tpu.memory_space<semaphore_mem>> -> memref<1x!tpu.dma_semaphore, #tpu.memory_space<semaphore_mem>>
    %88 = tpu.memref_squeeze %87 : memref<1x!tpu.dma_semaphore, #tpu.memory_space<semaphore_mem>> -> memref<!tpu.dma_semaphore, #tpu.memory_space<semaphore_mem>>
    tpu.wait_dma2 semaphore(%88 : memref<!tpu.dma_semaphore, #tpu.memory_space<semaphore_mem>>) src(%85 : memref<1x128xf32, #tpu.memory_space<any>>) dst(%86 : memref<1x128xf32, #tpu.memory_space<vmem>>)
    %c4_i32_63 = arith.constant 4 : i32
    %c0_i32_64 = arith.constant 0 : i32
    %89 = tpu.memref_slice %arg3[%41, %c0_i32_64] : memref<128x128xf32, #tpu.memory_space<any>> -> memref<1x128xf32, #tpu.memory_space<any>>
    %c4_i32_65 = arith.constant 4 : i32
    %c0_i32_66 = arith.constant 0 : i32
    %90 = tpu.memref_slice %arg5[%c4_i32_65, %c0_i32_66] : memref<8x128xf32, #tpu.memory_space<vmem>> -> memref<1x128xf32, #tpu.memory_space<vmem>>
    %91 = tpu.memref_slice %arg6[%c4_i32_63] : memref<8x!tpu.dma_semaphore, #tpu.memory_space<semaphore_mem>> -> memref<1x!tpu.dma_semaphore, #tpu.memory_space<semaphore_mem>>
    %92 = tpu.memref_squeeze %91 : memref<1x!tpu.dma_semaphore, #tpu.memory_space<semaphore_mem>> -> memref<!tpu.dma_semaphore, #tpu.memory_space<semaphore_mem>>
    tpu.wait_dma2 semaphore(%92 : memref<!tpu.dma_semaphore, #tpu.memory_space<semaphore_mem>>) src(%89 : memref<1x128xf32, #tpu.memory_space<any>>) dst(%90 : memref<1x128xf32, #tpu.memory_space<vmem>>)
    %c5_i32_67 = arith.constant 5 : i32
    %c0_i32_68 = arith.constant 0 : i32
    %93 = tpu.memref_slice %arg3[%50, %c0_i32_68] : memref<128x128xf32, #tpu.memory_space<any>> -> memref<1x128xf32, #tpu.memory_space<any>>
    %c5_i32_69 = arith.constant 5 : i32
    %c0_i32_70 = arith.constant 0 : i32
    %94 = tpu.memref_slice %arg5[%c5_i32_69, %c0_i32_70] : memref<8x128xf32, #tpu.memory_space<vmem>> -> memref<1x128xf32, #tpu.memory_space<vmem>>
    %95 = tpu.memref_slice %arg6[%c5_i32_67] : memref<8x!tpu.dma_semaphore, #tpu.memory_space<semaphore_mem>> -> memref<1x!tpu.dma_semaphore, #tpu.memory_space<semaphore_mem>>
    %96 = tpu.memref_squeeze %95 : memref<1x!tpu.dma_semaphore, #tpu.memory_space<semaphore_mem>> -> memref<!tpu.dma_semaphore, #tpu.memory_space<semaphore_mem>>
    tpu.wait_dma2 semaphore(%96 : memref<!tpu.dma_semaphore, #tpu.memory_space<semaphore_mem>>) src(%93 : memref<1x128xf32, #tpu.memory_space<any>>) dst(%94 : memref<1x128xf32, #tpu.memory_space<vmem>>)
    %c6_i32_71 = arith.constant 6 : i32
    %c0_i32_72 = arith.constant 0 : i32
    %97 = tpu.memref_slice %arg3[%59, %c0_i32_72] : memref<128x128xf32, #tpu.memory_space<any>> -> memref<1x128xf32, #tpu.memory_space<any>>
    %c6_i32_73 = arith.constant 6 : i32
    %c0_i32_74 = arith.constant 0 : i32
    %98 = tpu.memref_slice %arg5[%c6_i32_73, %c0_i32_74] : memref<8x128xf32, #tpu.memory_space<vmem>> -> memref<1x128xf32, #tpu.memory_space<vmem>>
    %99 = tpu.memref_slice %arg6[%c6_i32_71] : memref<8x!tpu.dma_semaphore, #tpu.memory_space<semaphore_mem>> -> memref<1x!tpu.dma_semaphore, #tpu.memory_space<semaphore_mem>>
    %100 = tpu.memref_squeeze %99 : memref<1x!tpu.dma_semaphore, #tpu.memory_space<semaphore_mem>> -> memref<!tpu.dma_semaphore, #tpu.memory_space<semaphore_mem>>
    tpu.wait_dma2 semaphore(%100 : memref<!tpu.dma_semaphore, #tpu.memory_space<semaphore_mem>>) src(%97 : memref<1x128xf32, #tpu.memory_space<any>>) dst(%98 : memref<1x128xf32, #tpu.memory_space<vmem>>)
    %c7_i32_75 = arith.constant 7 : i32
    %c0_i32_76 = arith.constant 0 : i32
    %101 = tpu.memref_slice %arg3[%68, %c0_i32_76] : memref<128x128xf32, #tpu.memory_space<any>> -> memref<1x128xf32, #tpu.memory_space<any>>
    %c7_i32_77 = arith.constant 7 : i32
    %c0_i32_78 = arith.constant 0 : i32
    %102 = tpu.memref_slice %arg5[%c7_i32_77, %c0_i32_78] : memref<8x128xf32, #tpu.memory_space<vmem>> -> memref<1x128xf32, #tpu.memory_space<vmem>>
    %103 = tpu.memref_slice %arg6[%c7_i32_75] : memref<8x!tpu.dma_semaphore, #tpu.memory_space<semaphore_mem>> -> memref<1x!tpu.dma_semaphore, #tpu.memory_space<semaphore_mem>>
    %104 = tpu.memref_squeeze %103 : memref<1x!tpu.dma_semaphore, #tpu.memory_space<semaphore_mem>> -> memref<!tpu.dma_semaphore, #tpu.memory_space<semaphore_mem>>
    tpu.wait_dma2 semaphore(%104 : memref<!tpu.dma_semaphore, #tpu.memory_space<semaphore_mem>>) src(%101 : memref<1x128xf32, #tpu.memory_space<any>>) dst(%102 : memref<1x128xf32, #tpu.memory_space<vmem>>)
    %c0 = arith.constant 0 : index
    %c0_79 = arith.constant 0 : index
    %105 = vector.load %arg2[%c0, %c0_79] : memref<8x128xf32, #tpu.memory_space<vmem>>, vector<8x128xf32>
    %c0_80 = arith.constant 0 : index
    %c0_81 = arith.constant 0 : index
    %106 = vector.load %arg5[%c0_80, %c0_81] : memref<8x128xf32, #tpu.memory_space<vmem>>, vector<8x128xf32>
    %107 = arith.addf %106, %105 : vector<8x128xf32>
    %c0_82 = arith.constant 0 : index
    %c0_83 = arith.constant 0 : index
    %108 = vector.load %arg4[%c0_82, %c0_83] : memref<8x128xf32, #tpu.memory_space<vmem>>, vector<8x128xf32>
    tpu.vector_store %arg4[%c0_82, %c0_83], %107 {strides = array<i32>} : memref<8x128xf32, #tpu.memory_space<vmem>>, vector<8x128xf32>,
    return
  }
  func.func @transform_0(%arg0: i32, %arg1: memref<16xi32, #tpu.memory_space<smem>>) -> (i32, i32) {
    %c0_i32 = arith.constant 0 : i32
    %c0_i32_0 = arith.constant 0 : i32
    %c0_i32_1 = arith.constant 0 : i32
    return %c0_i32, %c0_i32_0 : i32, i32
  }
  func.func @transform_2(%arg0: i32, %arg1: memref<16xi32, #tpu.memory_space<smem>>) -> (i32, i32) {
    %c0_i32 = arith.constant 0 : i32
    %c0_i32_0 = arith.constant 0 : i32
    return %arg0, %c0_i32 : i32, i32
  }
}

</mosaic_0001>

<llo_original>
// kernel: tpu_custom_call.1
$region0: #{tpu_custom_call.1}
  #allocation0 [shape = 'u32[]', space=smem, size = 0x4, offset = 0x4, fixed_abs, tag = 'smem constant byte address 0x4 - core index']
  #allocation1 [shape = 'u32[144,128]{1,0:T(1,128)}', space=vmem, size = 0x12000, scoped, tag = 'internal scratch']
  #allocation2 [shape = 'f32[8,128]{1,0:T(8,128)}', space=vmem, size = 0x1000, scoped, tag = 'scratch operand']
  #allocation3 [shape = 's32[8]{0}', space=sflag, size = 0x20, scoped, tag = 'scratch operand']
  #allocation4 [shape = 's32[1]{0}', space=sflag, size = 0x4, scoped, tag = 'scoped memory for tpu_custom_call.1']
  #allocation5 [shape = 'u8[512]{0}', space=smem, size = 0x200, scoped, tag = 'prefetched SMEM operand 0']
  #allocation10 [shape = 's32[]', space=sflag, size = 0x4, offset = 0, fixed_abs, tag = 'sflag constant byte address 0x0 - dummy sync flag']
  #allocation11 [shape = 's32[]', space=sflag, size = 0x4, offset = 0, fixed_abs, tag = 'sflag constant byte address 0x0 - dummy sync flag']
  #allocation12 [shape = 'u32[]', space=smem, size = 0x4, offset = 0x44, fixed_abs, tag = 'smem constant byte address 0x44 - assertion arg 0']
  #allocation13 [shape = 'u32[]', space=smem, size = 0x4, offset = 0x48, fixed_abs, tag = 'smem constant byte address 0x48 - assertion arg 1']
  #allocation14 [shape = 's32[]', space=sflag, size = 0x4, offset = 0, fixed_abs, tag = 'sflag constant byte address 0x0 - dummy sync flag']
  #allocation15 [shape = 's32[]', space=sflag, size = 0x4, offset = 0, fixed_abs, tag = 'sflag constant byte address 0x0 - dummy sync flag']
  #allocation16 [shape = 's32[]', space=sflag, size = 0x4, offset = 0, fixed_abs, tag = 'sflag constant byte address 0x0 - dummy sync flag']
  #allocation17 [shape = 's32[]', space=sflag, size = 0x4, offset = 0, fixed_abs, tag = 'sflag constant byte address 0x0 - dummy sync flag']
  #allocation18 [shape = 's32[]', space=sflag, size = 0x4, offset = 0, fixed_abs, tag = 'sflag constant byte address 0x0 - dummy sync flag']
  #allocation19 [shape = 's32[]', space=sflag, size = 0x4, offset = 0, fixed_abs, tag = 'sflag constant byte address 0x0 - dummy sync flag']
  #allocation20 [shape = 's32[]', space=sflag, size = 0x4, offset = 0, fixed_abs, tag = 'sflag constant byte address 0x0 - dummy sync flag']
  #allocation21 [shape = 's32[]', space=sflag, size = 0x4, offset = 0, fixed_abs, tag = 'sflag constant byte address 0x0 - dummy sync flag']
  #allocation22 [shape = 's32[]', space=sflag, size = 0x4, offset = 0, fixed_abs, tag = 'sflag constant byte address 0x0 - dummy sync flag']
  #allocation23 [shape = 's32[]', space=sflag, size = 0x4, offset = 0, fixed_abs, tag = 'sflag constant byte address 0x0 - dummy sync flag']
  #allocation24 [shape = 's32[]', space=sflag, size = 0x4, offset = 0, fixed_abs, tag = 'sflag constant byte address 0x0 - dummy sync flag']
  #allocation25 [shape = 's32[]', space=sflag, size = 0x4, offset = 0, fixed_abs, tag = 'sflag constant byte address 0x0 - dummy sync flag']
  #allocation26 [shape = 's32[]', space=sflag, size = 0x4, offset = 0, fixed_abs, tag = 'sflag constant byte address 0x0 - dummy sync flag']
  #allocation27 [shape = 's32[]', space=sflag, size = 0x4, offset = 0, fixed_abs, tag = 'sflag constant byte address 0x0 - dummy sync flag']
  %s0 = inlined_call_operand.hbm [shape: s32[16], index: 0, kind: input, shape index: {}]
  %s1 = inlined_call_operand.hbm [shape: f32[8,128], index: 1, kind: input, shape index: {}]
  %s2 = inlined_call_operand.hbm [shape: f32[128,128], index: 2, kind: input, shape index: {}]
  %s3 = inlined_call_operand.hbm [shape: f32[16,128], index: 3, kind: output, shape index: {}]
  %s4 = sld [smem:[#allocation0]]
  $region73: #{tpu_custom_call.1} parent=0
    _
  %s6 = ssub.s32 1, %s4
  %s7 = scalar_select 0, %s6, %s4
  %9 = dma.hbm_to_smem %s0, 16, [#allocation5], [#allocation4]
  %10 = dma.done [#allocation4], 16
  %11 = sfence
  $region1: #{tpu_custom_call.1} parent=0
    #allocation6 [shape = 'u8[4096]{0}', space=vmem, size = 0x1000, scoped, tag = 'input window, operand 1, single buffered']
    #allocation7 [shape = 's32[2]{0}', space=sflag, size = 0x8, scoped, tag = 'scoped memory for tpu_custom_call.1']
    #allocation8 [shape = 's32[2]{0}', space=sflag, size = 0x8, scoped, tag = 'scoped memory for tpu_custom_call.1']
    #allocation9 [shape = 'u8[8192]{0}', space=vmem, size = 0x2000, scoped, tag = 'output window, operand 0']
    %12 = vsyncpa [#allocation7], 0
    %13 = vsyncpa [#allocation8], 0
    %s14 = scalar_lea.sflag [#allocation8], 1
    %15 = vsyncpa %s14, 0
    loop: start=0, step=1, limit=4
    $region2: #{tpu_custom_call.1} parent=1 // loop_pre_header
      _
    $region3: #{tpu_custom_call.1} parent=1 // loop_header
      %s17 = sphi 0, %s21
      %p18 = scmp.ge.s32.totalorder %s17, 4
      %s25 = sphi 0, %s25
      %s27 = sphi 0, %s25
      %s28 = sphi 0, %s27
      %s42 = sphi 0, %s28
      %s48 = sphi 0, %s50
      %s51 = sphi 0, %s48
      %s52 = sphi 0, %s51
      %s68 = sphi 0, %s52
    $region4: #{tpu_custom_call.1} parent=1 // loop_header_branch
      %20 = sbr.rel (%p18) target = $region8
    $region5: #{tpu_custom_call.1} parent=1 // loop_body
      %s22 = ssub.s32 %s17, 1
      %s23 = ssub.s32 %s17, 2
      %s24 = sadd.s32 %s17, 1
      %s26 = sadd.s32 %s25, 1
      %p29 = scmp.eq.s32.totalorder %s17, 1
      %p30 = scmp.ne.s32.totalorder %s25, %s27
      %p31 = scmp.eq.s32.totalorder %s17, 0
      %p32 = por %p30, %p31
      %p33 = scmp.ne.s32.totalorder %s25, %s27
      %p34 = scmp.eq.s32.totalorder %s22, 1
      %p35 = por %p33, %p34
      %p36 = scmp.ne.s32.totalorder %s27, %s28
      %p37 = scmp.eq.s32.totalorder %s22, 0
      %p38 = por %p36, %p37
      %p39 = scmp.ne.s32.totalorder %s27, %s28
      %p40 = scmp.eq.s32.totalorder %s23, 1
      %p41 = por %p39, %p40
      %p43 = scmp.ne.s32.totalorder %s28, %s42
      %p44 = scmp.eq.s32.totalorder %s23, 0
      %p45 = por %p43, %p44
      %s46 = ssub.s32 %s17, %s24
      %p47 = scmp.eq.s32.totalorder %s46, 0
      %s49 = sadd.s32 %s48, 1
      %s50 = scalar_select %p47, %s48, %s49
      %p53 = pneg %p47
      %p54 = scmp.eq.s32.totalorder %s17, 1
      %p55 = por %p53, %p54
      %p56 = scmp.ne.s32.totalorder %s48, %s51
      %p57 = scmp.eq.s32.totalorder %s17, 0
      %p58 = por %p56, %p57
      %p59 = scmp.ne.s32.totalorder %s48, %s51
      %p60 = scmp.eq.s32.totalorder %s22, 1
      %p61 = por %p59, %p60
      %p62 = scmp.ne.s32.totalorder %s51, %s52
      %p63 = scmp.eq.s32.totalorder %s22, 0
      %p64 = por %p62, %p63
      %p65 = scmp.ne.s32.totalorder %s51, %s52
      %p66 = scmp.eq.s32.totalorder %s23, 1
      %p67 = por %p65, %p66
      %p69 = scmp.ne.s32.totalorder %s52, %s68
      %p70 = scmp.eq.s32.totalorder %s23, 0
      %p71 = por %p69, %p70
      %p72 = scmp.le.s32.totalorder 1, %s17
      %p73 = scmp.lt.s32.totalorder %s17, 3
      %p74 = pnand %p72, %p73
      %p75 = pneg %p74
      // Predicated region
      $region9: #{tpu_custom_call.1} parent=5 // pred_check
        _
      $region10: #{tpu_custom_call.1} parent=5 // pred_check_branch
        %77 = sbr.rel (%p74) target = $region12
      $region11: #{tpu_custom_call.1} parent=5 // pred_region
        %s78 = ssub.s32 %s17, 1
        // Predicated region
        $region13: #{tpu_custom_call.1} parent=11 // pred_check
          %p79 = pneg %p38
        $region14: #{tpu_custom_call.1} parent=11 // pred_check_branch
          %81 = sbr.rel (%p79) target = $region16
        $region15: #{tpu_custom_call.1} parent=11 // pred_region
          %s83 = ssub.s32 128, 128
          %84 = vsyncadd [#allocation7], %s83
          %s86 = sshll.u32 [#allocation6], 4
          %s87 = int_to_ptr.vmem [resolvable:$true] %s86
          %89 = dma.hbm_to_vmem [thread:$0]  %s1, 128, %s87, [#allocation7]
        $region16: #{tpu_custom_call.1} parent=11 // pred_fallthru
          _
      $region12: #{tpu_custom_call.1} parent=5 // pred_fallthru
        _
      %p90 = scmp.lt.s32.totalorder %s17, 2
      // Predicated region
      $region17: #{tpu_custom_call.1} parent=5 // pred_check
        %p91 = pneg %p90
      $region18: #{tpu_custom_call.1} parent=5 // pred_check_branch
        %93 = sbr.rel (%p91) target = $region20
      $region19: #{tpu_custom_call.1} parent=5 // pred_region
        _
      $region20: #{tpu_custom_call.1} parent=5 // pred_fallthru
        _
      %p94 = scmp.le.s32.totalorder 1, %s17
      %p95 = scmp.lt.s32.totalorder %s17, 3
      %p96 = pnand %p94, %p95
      %p97 = pneg %p96
      // Predicated region
      $region21: #{tpu_custom_call.1} parent=5 // pred_check
        _
      $region22: #{tpu_custom_call.1} parent=5 // pred_check_branch
        %99 = sbr.rel (%p96) target = $region24
      $region23: #{tpu_custom_call.1} parent=5 // pred_region
        %s100 = ssub.s32 %s17, 1
        // Predicated region
        $region25: #{tpu_custom_call.1} parent=23 // pred_check
          %p101 = pneg %p38
        $region26: #{tpu_custom_call.1} parent=23 // pred_check_branch
          %103 = sbr.rel (%p101) target = $region28
        $region27: #{tpu_custom_call.1} parent=23 // pred_region
          %104 = dma.done [#allocation7], 128
        $region28: #{tpu_custom_call.1} parent=23 // pred_fallthru
          _
        %p105 = pneg %p38
        %p106 = pneg %p35
        %p107 = pneg %p64
        %p108 = pneg %p61
        %s109 = sand.u32 %s51, 1
        %s110 = scalar_lea.sflag [#allocation8], %s109
        %s111 = sand.u32 %s51, 1
        %s112 = smul.addr %s111, 8
        %s113 = scalar_lea.vmem [#allocation9], %s112
        %s114 = smul.u32 %s22, 8
        %s115 = sld [smem:[#allocation5 + %s114]]
        %p116 = scmp.gt.s32.totalorder %s115, 0
        %s117 = scalar_select %p116, %s115, 0
        %p118 = scmp.lt.s32.totalorder %s117, 127
        %s119 = scalar_select %p118, %s117, 127
        %s120 = smul.addr %s119, 16
        %s121 = scalar_lea.hbm %s2, %s120
        // Predicated region
        $region29: #{tpu_custom_call.1} parent=23 // pred_check
          _
        $region30: #{tpu_custom_call.1} parent=23 // pred_check_branch
          %123 = sbr.rel target = $region32
        $region31: #{tpu_custom_call.1} parent=23 // pred_region
          %124 = sst [smem:[#allocation12]] [#allocation11]
          %125 = sst [smem:[#allocation13]] [#allocation10]
        $region32: #{tpu_custom_call.1} parent=23 // pred_fallthru
          _
        %127 = shalt.err (0)
        %s129 = sshll.u32 [#allocation2], 4
        %s130 = int_to_ptr.vmem [resolvable:$true] %s129
        %132 = dma.hbm_to_vmem [thread:$0]  %s121, 16, %s130, [#allocation3]
        %s133 = sadd.s32 %s114, 1
        %s134 = sld [smem:[#allocation5 + %s133]]
        %p135 = scmp.gt.s32.totalorder %s134, 0
        %s136 = scalar_select %p135, %s134, 0
        %p137 = scmp.lt.s32.totalorder %s136, 127
        %s138 = scalar_select %p137, %s136, 127
        %s139 = smul.addr %s138, 16
        %s140 = scalar_lea.hbm %s2, %s139
        %s141 = scalar_lea.vmem [#allocation2], 1
        %s142 = scalar_lea.sflag [#allocation3], 1
        // Predicated region
        $region33: #{tpu_custom_call.1} parent=23 // pred_check
          _
        $region34: #{tpu_custom_call.1} parent=23 // pred_check_branch
          %144 = sbr.rel target = $region36
        $region35: #{tpu_custom_call.1} parent=23 // pred_region
          %145 = sst [smem:[#allocation12]] [#allocation15]
          %146 = sst [smem:[#allocation13]] [#allocation14]
        $region36: #{tpu_custom_call.1} parent=23 // pred_fallthru
          _
        %148 = shalt.err (0)
        %s150 = sshll.u32 %s141, 4
        %s151 = int_to_ptr.vmem [resolvable:$true] %s150
        %153 = dma.hbm_to_vmem [thread:$0]  %s140, 16, %s151, %s142
        %s154 = sadd.s32 %s114, 2
        %s155 = sld [smem:[#allocation5 + %s154]]
        %p156 = scmp.gt.s32.totalorder %s155, 0
        %s157 = scalar_select %p156, %s155, 0
        %p158 = scmp.lt.s32.totalorder %s157, 127
        %s159 = scalar_select %p158, %s157, 127
        %s160 = smul.addr %s159, 16
        %s161 = scalar_lea.hbm %s2, %s160
        %s162 = scalar_lea.vmem [#allocation2], 2
        %s163 = scalar_lea.sflag [#allocation3], 2
        // Predicated region
        $region37: #{tpu_custom_call.1} parent=23 // pred_check
          _
        $region38: #{tpu_custom_call.1} parent=23 // pred_check_branch
          %165 = sbr.rel target = $region40
        $region39: #{tpu_custom_call.1} parent=23 // pred_region
          %166 = sst [smem:[#allocation12]] [#allocation17]
          %167 = sst [smem:[#allocation13]] [#allocation16]
        $region40: #{tpu_custom_call.1} parent=23 // pred_fallthru
          _
        %169 = shalt.err (0)
        %s171 = sshll.u32 %s162, 4
        %s172 = int_to_ptr.vmem [resolvable:$true] %s171
        %174 = dma.hbm_to_vmem [thread:$0]  %s161, 16, %s172, %s163
        %s175 = sadd.s32 %s114, 3
        %s176 = sld [smem:[#allocation5 + %s175]]
        %p177 = scmp.gt.s32.totalorder %s176, 0
        %s178 = scalar_select %p177, %s176, 0
        %p179 = scmp.lt.s32.totalorder %s178, 127
        %s180 = scalar_select %p179, %s178, 127
        %s181 = smul.addr %s180, 16
        %s182 = scalar_lea.hbm %s2, %s181
        %s183 = scalar_lea.vmem [#allocation2], 3
        %s184 = scalar_lea.sflag [#allocation3], 3
        // Predicated region
        $region41: #{tpu_custom_call.1} parent=23 // pred_check
          _
        $region42: #{tpu_custom_call.1} parent=23 // pred_check_branch
          %186 = sbr.rel target = $region44
        $region43: #{tpu_custom_call.1} parent=23 // pred_region
          %187 = sst [smem:[#allocation12]] [#allocation19]
          %188 = sst [smem:[#allocation13]] [#allocation18]
        $region44: #{tpu_custom_call.1} parent=23 // pred_fallthru
          _
        %190 = shalt.err (0)
        %s192 = sshll.u32 %s183, 4
        %s193 = int_to_ptr.vmem [resolvable:$true] %s192
        %195 = dma.hbm_to_vmem [thread:$0]  %s182, 16, %s193, %s184
        %s196 = sadd.s32 %s114, 4
        %s197 = sld [smem:[#allocation5 + %s196]]
        %p198 = scmp.gt.s32.totalorder %s197, 0
        %s199 = scalar_select %p198, %s197, 0
        %p200 = scmp.lt.s32.totalorder %s199, 127
        %s201 = scalar_select %p200, %s199, 127
        %s202 = smul.addr %s201, 16
        %s203 = scalar_lea.hbm %s2, %s202
        %s204 = scalar_lea.vmem [#allocation2], 4
        %s205 = scalar_lea.sflag [#allocation3], 4
        // Predicated region
        $region45: #{tpu_custom_call.1} parent=23 // pred_check
          _
        $region46: #{tpu_custom_call.1} parent=23 // pred_check_branch
          %207 = sbr.rel target = $region48
        $region47: #{tpu_custom_call.1} parent=23 // pred_region
          %208 = sst [smem:[#allocation12]] [#allocation21]
          %209 = sst [smem:[#allocation13]] [#allocation20]
        $region48: #{tpu_custom_call.1} parent=23 // pred_fallthru
          _
        %211 = shalt.err (0)
        %s213 = sshll.u32 %s204, 4
        %s214 = int_to_ptr.vmem [resolvable:$true] %s213
        %216 = dma.hbm_to_vmem [thread:$0]  %s203, 16, %s214, %s205
        %s217 = sadd.s32 %s114, 5
        %s218 = sld [smem:[#allocation5 + %s217]]
        %p219 = scmp.gt.s32.totalorder %s218, 0
        %s220 = scalar_select %p219, %s218, 0
        %p221 = scmp.lt.s32.totalorder %s220, 127
        %s222 = scalar_select %p221, %s220, 127
        %s223 = smul.addr %s222, 16
        %s224 = scalar_lea.hbm %s2, %s223
        %s225 = scalar_lea.vmem [#allocation2], 5
        %s226 = scalar_lea.sflag [#allocation3], 5
        // Predicated region
        $region49: #{tpu_custom_call.1} parent=23 // pred_check
          _
        $region50: #{tpu_custom_call.1} parent=23 // pred_check_branch
          %228 = sbr.rel target = $region52
        $region51: #{tpu_custom_call.1} parent=23 // pred_region
          %229 = sst [smem:[#allocation12]] [#allocation23]
          %230 = sst [smem:[#allocation13]] [#allocation22]
        $region52: #{tpu_custom_call.1} parent=23 // pred_fallthru
          _
        %232 = shalt.err (0)
        %s234 = sshll.u32 %s225, 4
        %s235 = int_to_ptr.vmem [resolvable:$true] %s234
        %237 = dma.hbm_to_vmem [thread:$0]  %s224, 16, %s235, %s226
        %s238 = sadd.s32 %s114, 6
        %s239 = sld [smem:[#allocation5 + %s238]]
        %p240 = scmp.gt.s32.totalorder %s239, 0
        %s241 = scalar_select %p240, %s239, 0
        %p242 = scmp.lt.s32.totalorder %s241, 127
        %s243 = scalar_select %p242, %s241, 127
        %s244 = smul.addr %s243, 16
        %s245 = scalar_lea.hbm %s2, %s244
        %s246 = scalar_lea.vmem [#allocation2], 6
        %s247 = scalar_lea.sflag [#allocation3], 6
        // Predicated region
        $region53: #{tpu_custom_call.1} parent=23 // pred_check
          _
        $region54: #{tpu_custom_call.1} parent=23 // pred_check_branch
          %249 = sbr.rel target = $region56
        $region55: #{tpu_custom_call.1} parent=23 // pred_region
          %250 = sst [smem:[#allocation12]] [#allocation25]
          %251 = sst [smem:[#allocation13]] [#allocation24]
        $region56: #{tpu_custom_call.1} parent=23 // pred_fallthru
          _
        %253 = shalt.err (0)
        %s255 = sshll.u32 %s246, 4
        %s256 = int_to_ptr.vmem [resolvable:$true] %s255
        %258 = dma.hbm_to_vmem [thread:$0]  %s245, 16, %s256, %s247
        %s259 = sadd.s32 %s114, 7
        %s260 = sld [smem:[#allocation5 + %s259]]
        %p261 = scmp.gt.s32.totalorder %s260, 0
        %s262 = scalar_select %p261, %s260, 0
        %p263 = scmp.lt.s32.totalorder %s262, 127
        %s264 = scalar_select %p263, %s262, 127
        %s265 = smul.addr %s264, 16
        %s266 = scalar_lea.hbm %s2, %s265
        %s267 = scalar_lea.vmem [#allocation2], 7
        %s268 = scalar_lea.sflag [#allocation3], 7
        // Predicated region
        $region57: #{tpu_custom_call.1} parent=23 // pred_check
          _
        $region58: #{tpu_custom_call.1} parent=23 // pred_check_branch
          %270 = sbr.rel target = $region60
        $region59: #{tpu_custom_call.1} parent=23 // pred_region
          %271 = sst [smem:[#allocation12]] [#allocation27]
          %272 = sst [smem:[#allocation13]] [#allocation26]
        $region60: #{tpu_custom_call.1} parent=23 // pred_fallthru
          _
        %274 = shalt.err (0)
        %s276 = sshll.u32 %s267, 4
        %s277 = int_to_ptr.vmem [resolvable:$true] %s276
        %279 = dma.hbm_to_vmem [thread:$0]  %s266, 16, %s277, %s268
        %s280 = smul.u32 1, 1
        %s281 = sshll.u32 %s280, 4
        %282 = dma.done [#allocation3], %s281
        %s283 = sshll.u32 %s280, 4
        %284 = dma.done %s142, %s283
        %s285 = sshll.u32 %s280, 4
        %286 = dma.done %s163, %s285
        %s287 = sshll.u32 %s280, 4
        %288 = dma.done %s184, %s287
        %s289 = sshll.u32 %s280, 4
        %290 = dma.done %s205, %s289
        %s291 = sshll.u32 %s280, 4
        %292 = dma.done %s226, %s291
        %s293 = sshll.u32 %s280, 4
        %294 = dma.done %s247, %s293
        %s295 = sshll.u32 %s280, 4
        %296 = dma.done %s268, %s295
        %v297 = vld [vmem:[#allocation6] sm:$0xff]
        %v298 = vld [vmem:[#allocation2] sm:$0xff]
        %v299 = vadd.f32 %v298, %v297
        %300 = vst [vmem:[%s113] sm:$0xff] %v299
        %s301 = sand.u32 %s51, 1
        %s302 = scalar_lea.sflag [#allocation8], %s301
        %s303 = sand.u32 %s51, 1
        %s304 = smul.addr %s303, 8
        %s305 = scalar_lea.vmem [#allocation9], %s304
        // Predicated region
        $region61: #{tpu_custom_call.1} parent=23 // pred_check
          %p306 = pneg %p61
        $region62: #{tpu_custom_call.1} parent=23 // pred_check_branch
          %308 = sbr.rel (%p306) target = $region64
        $region63: #{tpu_custom_call.1} parent=23 // pred_region
          %s310 = ssub.s32 128, 128
          %311 = vsyncadd %s302, %s310
          %s312 = smul.addr %s22, 128
          %s313 = scalar_lea.hbm %s3, %s312
          %s315 = sshll.u32 %s305, 4
          %s316 = int_to_ptr.vmem [resolvable:$true] %s315
          %318 = dma.vmem_to_hbm [thread:$0]  %s316, 128, %s313, %s302
        $region64: #{tpu_custom_call.1} parent=23 // pred_fallthru
          _
      $region24: #{tpu_custom_call.1} parent=5 // pred_fallthru
        _
      %p319 = scmp.le.s32.totalorder 2, %s17
      // Predicated region
      $region65: #{tpu_custom_call.1} parent=5 // pred_check
        %p320 = pneg %p319
      $region66: #{tpu_custom_call.1} parent=5 // pred_check_branch
        %322 = sbr.rel (%p320) target = $region68
      $region67: #{tpu_custom_call.1} parent=5 // pred_region
        %s323 = ssub.s32 %s17, 2
        // Predicated region
        $region69: #{tpu_custom_call.1} parent=67 // pred_check
          %p324 = pneg %p67
        $region70: #{tpu_custom_call.1} parent=67 // pred_check_branch
          %326 = sbr.rel (%p324) target = $region72
        $region71: #{tpu_custom_call.1} parent=67 // pred_region
          %s327 = sand.u32 %s52, 1
          %s328 = scalar_lea.sflag [#allocation8], %s327
          %s329 = sand.u32 %s52, 1
          %s330 = smul.addr %s329, 8
          %s331 = scalar_lea.vmem [#allocation9], %s330
          %332 = dma.done %s328, 128
        $region72: #{tpu_custom_call.1} parent=67 // pred_fallthru
          _
      $region68: #{tpu_custom_call.1} parent=5 // pred_fallthru
        _
    $region6: #{tpu_custom_call.1} parent=1 // loop_footer
      %s21 = sadd.s32 1, %s17
    $region7: #{tpu_custom_call.1} parent=1 // loop_footer_branch
      %16 = sbr.rel target = $region3
    $region8: #{tpu_custom_call.1} parent=1 // loop_exit
      _
    %333 = vsyncpa [#allocation7], 1
    %s334 = scalar_lea.sflag [#allocation7], 1
    %335 = vsyncpa %s334, 1
    %336 = vsyncpa [#allocation8], 1
    %s337 = scalar_lea.sflag [#allocation8], 1
    %338 = vsyncpa %s337, 1
  %339 = vsyncmov [#allocation3]
  %s340 = vpop.sfrf %339
  %p341 = scmp.eq.s32.totalorder %s340, 0
  %p342 = pneg %p341
  %344 = shalt.err (%p342)
  %s345 = scalar_lea.sflag [#allocation3], 1
  %346 = vsyncmov %s345
  %s347 = vpop.sfrf %346
  %p348 = scmp.eq.s32.totalorder %s347, 0
  %p349 = pneg %p348
  %351 = shalt.err (%p349)
  %s352 = scalar_lea.sflag [#allocation3], 2
  %353 = vsyncmov %s352
  %s354 = vpop.sfrf %353
  %p355 = scmp.eq.s32.totalorder %s354, 0
  %p356 = pneg %p355
  %358 = shalt.err (%p356)
  %s359 = scalar_lea.sflag [#allocation3], 3
  %360 = vsyncmov %s359
  %s361 = vpop.sfrf %360
  %p362 = scmp.eq.s32.totalorder %s361, 0
  %p363 = pneg %p362
  %365 = shalt.err (%p363)
  %s366 = scalar_lea.sflag [#allocation3], 4
  %367 = vsyncmov %s366
  %s368 = vpop.sfrf %367
  %p369 = scmp.eq.s32.totalorder %s368, 0
  %p370 = pneg %p369
  %372 = shalt.err (%p370)
  %s373 = scalar_lea.sflag [#allocation3], 5
  %374 = vsyncmov %s373
  %s375 = vpop.sfrf %374
  %p376 = scmp.eq.s32.totalorder %s375, 0
  %p377 = pneg %p376
  %379 = shalt.err (%p377)
  %s380 = scalar_lea.sflag [#allocation3], 6
  %381 = vsyncmov %s380
  %s382 = vpop.sfrf %381
  %p383 = scmp.eq.s32.totalorder %s382, 0
  %p384 = pneg %p383
  %386 = shalt.err (%p384)
  %s387 = scalar_lea.sflag [#allocation3], 7
  %388 = vsyncmov %s387
  %s389 = vpop.sfrf %388
  %p390 = scmp.eq.s32.totalorder %s389, 0
  %p391 = pneg %p390
  %393 = shalt.err (%p391)

</llo_original>
